<compile_context>
chip_gen: v7x
topology: tpu7x:2x2x1
jax: 0.10.0
libtpu: 0.0.40
codegen_flags: <defaults>
</compile_context>

<pallas_src>
import jax
import jax.numpy as jnp
from jax.experimental import pallas as pl
from jax.experimental.pallas import tpu as pltpu

BN_EPS = 1e-5
LANE = 128


def _dummy_model_kernel(feat_ref, params_ref, logits_ref, loss_ref):
    # feat_ref  : (N, K)         -- batch of feature rows (single contiguous tile)
    # params_ref: (K+3, OUT_PAD) -- rows 0..K-1 = W^T, K = bias, K+1 = gamma, K+2 = beta
    n, k = feat_ref.shape

    # Linear on the VPU: x[n, f] = bias[f] + sum_j feat[n, j] * W^T[j, f]
    # Unrolled K-term FMA chain; (N,1)*(1,OUT_PAD) broadcasts, no MXU involved.
    x = params_ref[k:k + 1, :]                       # bias row, broadcasts over batch
    for j in range(k):                               # static, unrolled
        x = x + feat_ref[:, j:j + 1] * params_ref[j:j + 1, :]

    # BatchNorm1d, training mode: batch statistics, biased variance, affine.
    mean = jnp.mean(x, axis=0, keepdims=True)                     # (1, OUT_PAD)
    var = jnp.mean(jnp.square(x - mean), axis=0, keepdims=True)   # biased variance
    x_hat = (x - mean) * jax.lax.rsqrt(var + BN_EPS)
    y = x_hat * params_ref[k + 1:k + 2, :] + params_ref[k + 2:k + 3, :]

    # Lane-dense, unmasked store; wrapper slices the 4 real lanes.
    logits_ref[...] = y.astype(logits_ref.dtype)

    # Padded lanes of y are exact zeros (padded W/bias/gamma/beta are zero =>
    # x = 0, x_hat = 0, y = 0), so the full-tile sum equals sum over OUT_F lanes.
    loss_ref[0, 0] = jnp.sum(y)


def pack_params(weight, bias, gamma, beta):
    """Pack all parameters into one lane-dense (K+3, OUT_PAD) block.

    Done ONCE at model init; not part of the per-call hot path.
    weight: (OUT_F, IN_F) PyTorch layout; bias/gamma/beta: (OUT_F,).
    """
    out_f, _in_f = weight.shape
    out_pad = ((out_f + LANE - 1) // LANE) * LANE
    small = jnp.concatenate(
        [weight.T.astype(jnp.float32),                            # (K, OUT_F)
         jnp.stack([bias, gamma, beta]).astype(jnp.float32)],     # (3, OUT_F)
        axis=0)                                                   # (K+3, OUT_F)
    return jnp.pad(small, ((0, 0), (0, out_pad - out_f)))         # (K+3, OUT_PAD)


def dummy_model_forward(feat, packed_params, *, out_f):
    """feat: (N, K) f32; packed_params: (K+3, OUT_PAD) from pack_params."""
    n, _k = feat.shape
    out_pad = packed_params.shape[1]

    logits_full, loss = pl.pallas_call(
        _dummy_model_kernel,
        out_shape=(
            jax.ShapeDtypeStruct((n, out_pad), jnp.float32),
            jax.ShapeDtypeStruct((1, 1), jnp.float32),
        ),
        # Tiny problem: no grid, whole arrays live in VMEM as single blocks.
        in_specs=[
            pl.BlockSpec(memory_space=pltpu.MemorySpace.VMEM),   # feat (N, K)
            pl.BlockSpec(memory_space=pltpu.MemorySpace.VMEM),   # packed params
        ],
        out_specs=(
            pl.BlockSpec(memory_space=pltpu.MemorySpace.VMEM),   # lane-dense logits
            pl.BlockSpec(memory_space=pltpu.MemorySpace.SMEM),   # scalar loss
        ),
    )(feat.astype(jnp.float32), packed_params)

    return dict(logits=logits_full[:, :out_f], loss=loss[0, 0])


if __name__ == "__main__":
    key = jax.random.PRNGKey(0)
    k_feat, k_w, k_b = jax.random.split(key, 3)

    N, IN_F, OUT_F = 8, 5, 4

    # Deterministic parameter init mimicking PyTorch defaults:
    # Linear: U(-1/sqrt(in), 1/sqrt(in)); BatchNorm1d: gamma=1, beta=0.
    bound = 1.0 / jnp.sqrt(jnp.float32(IN_F))
    weight = jax.random.uniform(k_w, (OUT_F, IN_F), jnp.float32, -bound, bound)
    bias = jax.random.uniform(k_b, (OUT_F,), jnp.float32, -bound, bound)
    gamma = jnp.ones((OUT_F,), jnp.float32)
    beta = jnp.zeros((OUT_F,), jnp.float32)

    feat = jax.random.normal(k_feat, (N, IN_F), jnp.float32)
    labels = jnp.zeros((N,), jnp.int32)   # unused by the forward pass, as in PyTorch

    # Packed once at "model init" -- amortized out of the hot path.
    packed_params = jax.block_until_ready(pack_params(weight, bias, gamma, beta))

    forward = jax.jit(dummy_model_forward, static_argnames=("out_f",))
    out = forward(feat, packed_params, out_f=OUT_F)
    jax.block_until_ready(out)

    # Reference check in plain JAX (training-mode BN with batch stats).
    x_ref = feat @ weight.T + bias
    mean = x_ref.mean(axis=0, keepdims=True)
    var = ((x_ref - mean) ** 2).mean(axis=0, keepdims=True)
    y_ref = (x_ref - mean) / jnp.sqrt(var + BN_EPS) * gamma + beta

    assert out["logits"].shape == (N, OUT_F)
    assert jnp.allclose(out["logits"], y_ref, atol=1e-5, rtol=1e-5)
    assert jnp.allclose(out["loss"], jnp.sum(y_ref), atol=1e-4, rtol=1e-4)

    print("KERNEL_OK")
</pallas_src>

<mosaic_0001>
module attributes {stable_mosaic.version = 11 : i64} {
  func.func @_dummy_model_kernel(%arg0: memref<8x5xf32, #tpu.memory_space<vmem>>, %arg1: memref<8x128xf32, #tpu.memory_space<vmem>>, %arg2: memref<8x128xf32, #tpu.memory_space<vmem>>, %arg3: memref<1x1xf32, #tpu.memory_space<smem>>) attributes {dimension_semantics = [], scalar_prefetch = 0 : i64, scratch_operands = 0 : i64, tpu.core_type = #tpu.core_type<tc>} {
    %c5 = arith.constant 5 : index
    %c0 = arith.constant 0 : index
    %0 = vector.load %arg1[%c5, %c0] : memref<8x128xf32, #tpu.memory_space<vmem>>, vector<1x128xf32>
    %c0_0 = arith.constant 0 : index
    %c0_1 = arith.constant 0 : index
    %1 = vector.load %arg0[%c0_0, %c0_1] : memref<8x5xf32, #tpu.memory_space<vmem>>, vector<8x1xf32>
    %c0_2 = arith.constant 0 : index
    %c0_3 = arith.constant 0 : index
    %2 = vector.load %arg1[%c0_2, %c0_3] : memref<8x128xf32, #tpu.memory_space<vmem>>, vector<1x128xf32>
    %3 = vector.broadcast %1 : vector<8x1xf32> to vector<8x128xf32>
    %4 = vector.broadcast %2 : vector<1x128xf32> to vector<8x128xf32>
    %5 = arith.mulf %3, %4 : vector<8x128xf32>
    %6 = vector.broadcast %0 : vector<1x128xf32> to vector<8x128xf32>
    %7 = arith.addf %6, %5 : vector<8x128xf32>
    %c0_4 = arith.constant 0 : index
    %c1 = arith.constant 1 : index
    %8 = vector.load %arg0[%c0_4, %c1] : memref<8x5xf32, #tpu.memory_space<vmem>>, vector<8x1xf32>
    %c1_5 = arith.constant 1 : index
    %c0_6 = arith.constant 0 : index
    %9 = vector.load %arg1[%c1_5, %c0_6] : memref<8x128xf32, #tpu.memory_space<vmem>>, vector<1x128xf32>
    %10 = vector.broadcast %8 : vector<8x1xf32> to vector<8x128xf32>
    %11 = vector.broadcast %9 : vector<1x128xf32> to vector<8x128xf32>
    %12 = arith.mulf %10, %11 : vector<8x128xf32>
    %13 = arith.addf %7, %12 : vector<8x128xf32>
    %c0_7 = arith.constant 0 : index
    %c2 = arith.constant 2 : index
    %14 = vector.load %arg0[%c0_7, %c2] : memref<8x5xf32, #tpu.memory_space<vmem>>, vector<8x1xf32>
    %c2_8 = arith.constant 2 : index
    %c0_9 = arith.constant 0 : index
    %15 = vector.load %arg1[%c2_8, %c0_9] : memref<8x128xf32, #tpu.memory_space<vmem>>, vector<1x128xf32>
    %16 = vector.broadcast %14 : vector<8x1xf32> to vector<8x128xf32>
    %17 = vector.broadcast %15 : vector<1x128xf32> to vector<8x128xf32>
    %18 = arith.mulf %16, %17 : vector<8x128xf32>
    %19 = arith.addf %13, %18 : vector<8x128xf32>
    %c0_10 = arith.constant 0 : index
    %c3 = arith.constant 3 : index
    %20 = vector.load %arg0[%c0_10, %c3] : memref<8x5xf32, #tpu.memory_space<vmem>>, vector<8x1xf32>
    %c3_11 = arith.constant 3 : index
    %c0_12 = arith.constant 0 : index
    %21 = vector.load %arg1[%c3_11, %c0_12] : memref<8x128xf32, #tpu.memory_space<vmem>>, vector<1x128xf32>
    %22 = vector.broadcast %20 : vector<8x1xf32> to vector<8x128xf32>
    %23 = vector.broadcast %21 : vector<1x128xf32> to vector<8x128xf32>
    %24 = arith.mulf %22, %23 : vector<8x128xf32>
    %25 = arith.addf %19, %24 : vector<8x128xf32>
    %c0_13 = arith.constant 0 : index
    %c4 = arith.constant 4 : index
    %26 = vector.load %arg0[%c0_13, %c4] : memref<8x5xf32, #tpu.memory_space<vmem>>, vector<8x1xf32>
    %c4_14 = arith.constant 4 : index
    %c0_15 = arith.constant 0 : index
    %27 = vector.load %arg1[%c4_14, %c0_15] : memref<8x128xf32, #tpu.memory_space<vmem>>, vector<1x128xf32>
    %28 = vector.broadcast %26 : vector<8x1xf32> to vector<8x128xf32>
    %29 = vector.broadcast %27 : vector<1x128xf32> to vector<8x128xf32>
    %30 = arith.mulf %28, %29 : vector<8x128xf32>
    %31 = arith.addf %25, %30 : vector<8x128xf32>
    %cst = arith.constant dense<0.000000e+00> : vector<128xf32>
    %32 = vector.multi_reduction <add>, %31, %cst [0] : vector<8x128xf32> to vector<128xf32>
    %33 = vector.shape_cast %32 : vector<128xf32> to vector<1x128xf32>
    %cst_16 = arith.constant 8.000000e+00 : f32
    %34 = vector.broadcast %cst_16 : f32 to vector<1x128xf32>
    %35 = arith.divf %33, %34 : vector<1x128xf32>
    %36 = vector.broadcast %35 : vector<1x128xf32> to vector<8x128xf32>
    %37 = arith.subf %31, %36 : vector<8x128xf32>
    %38 = arith.mulf %37, %37 : vector<8x128xf32>
    %cst_17 = arith.constant dense<0.000000e+00> : vector<128xf32>
    %39 = vector.multi_reduction <add>, %38, %cst_17 [0] : vector<8x128xf32> to vector<128xf32>
    %40 = vector.shape_cast %39 : vector<128xf32> to vector<1x128xf32>
    %cst_18 = arith.constant 8.000000e+00 : f32
    %41 = vector.broadcast %cst_18 : f32 to vector<1x128xf32>
    %42 = arith.divf %40, %41 : vector<1x128xf32>
    %43 = vector.broadcast %35 : vector<1x128xf32> to vector<8x128xf32>
    %44 = arith.subf %31, %43 : vector<8x128xf32>
    %cst_19 = arith.constant 9.99999974E-6 : f32
    %45 = vector.broadcast %cst_19 : f32 to vector<1x128xf32>
    %46 = arith.addf %42, %45 : vector<1x128xf32>
    %47 = math.rsqrt %46 : vector<1x128xf32>
    %48 = vector.broadcast %47 : vector<1x128xf32> to vector<8x128xf32>
    %49 = arith.mulf %44, %48 : vector<8x128xf32>
    %c6 = arith.constant 6 : index
    %c0_20 = arith.constant 0 : index
    %50 = vector.load %arg1[%c6, %c0_20] : memref<8x128xf32, #tpu.memory_space<vmem>>, vector<1x128xf32>
    %51 = vector.broadcast %50 : vector<1x128xf32> to vector<8x128xf32>
    %52 = arith.mulf %49, %51 : vector<8x128xf32>
    %c7 = arith.constant 7 : index
    %c0_21 = arith.constant 0 : index
    %53 = vector.load %arg1[%c7, %c0_21] : memref<8x128xf32, #tpu.memory_space<vmem>>, vector<1x128xf32>
    %54 = vector.broadcast %53 : vector<1x128xf32> to vector<8x128xf32>
    %55 = arith.addf %52, %54 : vector<8x128xf32>
    %c0_22 = arith.constant 0 : index
    %c0_23 = arith.constant 0 : index
    %56 = vector.load %arg2[%c0_22, %c0_23] : memref<8x128xf32, #tpu.memory_space<vmem>>, vector<8x128xf32>
    tpu.vector_store %arg2[%c0_22, %c0_23], %55 {strides = array<i32>} : memref<8x128xf32, #tpu.memory_space<vmem>>, vector<8x128xf32>,
    %57 = vector.shape_cast %55 : vector<8x128xf32> to vector<1x8x128xf32>
    %cst_24 = arith.constant dense<0.000000e+00> : vector<1xf32>
    %58 = vector.multi_reduction <add>, %57, %cst_24 [1, 2] : vector<1x8x128xf32> to vector<1xf32>
    %59 = vector.shape_cast %58 : vector<1xf32> to vector<1x1x1xf32>
    %60 = vector.extract %59[0, 0, 0] : f32 from vector<1x1x1xf32>
    %c0_25 = arith.constant 0 : index
    %c0_26 = arith.constant 0 : index
    %61 = memref.load %arg3[%c0_25, %c0_26] : memref<1x1xf32, #tpu.memory_space<smem>>
    memref.store %60, %arg3[%c0_25, %c0_26] : memref<1x1xf32, #tpu.memory_space<smem>>
    return
  }
}

</mosaic_0001>

<llo_original>
// kernel: dummy_model_forward.1
$region0: #{dummy_model_forward.1}
  #allocation0 [shape = 'u32[]', space=smem, size = 0x4, offset = 0x4, fixed_abs, tag = 'smem constant byte address 0x4 - core index']
  #allocation1 [shape = 'u32[144,128]{1,0:T(1,128)}', space=vmem, size = 0x12000, scoped, tag = 'internal scratch']
  %s0 = inlined_call_operand.hbm [shape: f32[8,5], index: 0, kind: input, shape index: {}]
  %s1 = inlined_call_operand.hbm [shape: f32[8,128], index: 1, kind: input, shape index: {}]
  %s2 = inlined_call_operand.vmem [shape: f32[8,128], index: 2, kind: output, shape index: {0}]
  %s3 = inlined_call_operand.hbm [shape: f32[1,1], index: 3, kind: output, shape index: {1}]
  %4 = xla_tuple %s2, %s3
  %s5 = sld [smem:[#allocation0]]
  $region34: #{dummy_model_forward.1} parent=0
    _
  %s7 = ssub.s32 1, %s5
  %s8 = scalar_select 0, %s7, %s5
  $region1: #{dummy_model_forward.1} parent=0
    #allocation2 [shape = 'u8[4096]{0}', space=vmem, size = 0x1000, scoped, tag = 'input window, operand 0, single buffered']
    #allocation3 [shape = 's32[1]{0}', space=sflag, size = 0x4, scoped, tag = 'scoped memory for dummy_model_forward.1']
    #allocation4 [shape = 's32[1]{0}', space=sflag, size = 0x4, scoped, tag = 'scoped memory for dummy_model_forward.1']
    #allocation5 [shape = 'u8[4096]{0}', space=vmem, size = 0x1000, scoped, tag = 'input window, operand 1, single buffered']
    #allocation6 [shape = 's32[1]{0}', space=sflag, size = 0x4, scoped, tag = 'scoped memory for dummy_model_forward.1']
    #allocation7 [shape = 'u8[512]{0}', space=smem, size = 0x200, scoped, tag = 'output window, operand 1, single buffered']
    %9 = vsyncpa [#allocation3], 0
    %10 = vsyncpa [#allocation6], 0
    %11 = vsyncpa [#allocation4], 0
    // Predicated region
    $region2: #{dummy_model_forward.1} parent=1 // pred_check
      _
    $region3: #{dummy_model_forward.1} parent=1 // pred_check_branch
      %13 = sbr.rel (0) target = $region5
    $region4: #{dummy_model_forward.1} parent=1 // pred_region
      %s15 = ssub.s32 128, 128
      %16 = vsyncadd [#allocation3], %s15
      %s18 = sshll.u32 [#allocation2], 4
      %s19 = int_to_ptr.vmem [resolvable:$true] %s18
      %21 = dma.hbm_to_vmem [thread:$0]  %s0, 128, %s19, [#allocation3]
    $region5: #{dummy_model_forward.1} parent=1 // pred_fallthru
      _
    // Predicated region
    $region6: #{dummy_model_forward.1} parent=1 // pred_check
      _
    $region7: #{dummy_model_forward.1} parent=1 // pred_check_branch
      %23 = sbr.rel (0) target = $region9
    $region8: #{dummy_model_forward.1} parent=1 // pred_region
      %s25 = ssub.s32 128, 128
      %26 = vsyncadd [#allocation6], %s25
      %s28 = sshll.u32 [#allocation5], 4
      %s29 = int_to_ptr.vmem [resolvable:$true] %s28
      %31 = dma.hbm_to_vmem [thread:$0]  %s1, 128, %s29, [#allocation6]
    $region9: #{dummy_model_forward.1} parent=1 // pred_fallthru
      _
    // Predicated region
    $region10: #{dummy_model_forward.1} parent=1 // pred_check
      _
    $region11: #{dummy_model_forward.1} parent=1 // pred_check_branch
      %33 = sbr.rel (0) target = $region13
    $region12: #{dummy_model_forward.1} parent=1 // pred_region
      %34 = dma.done [#allocation3], 128
    $region13: #{dummy_model_forward.1} parent=1 // pred_fallthru
      _
    // Predicated region
    $region14: #{dummy_model_forward.1} parent=1 // pred_check
      _
    $region15: #{dummy_model_forward.1} parent=1 // pred_check_branch
      %36 = sbr.rel (0) target = $region17
    $region16: #{dummy_model_forward.1} parent=1 // pred_region
      %37 = dma.done [#allocation6], 128
    $region17: #{dummy_model_forward.1} parent=1 // pred_fallthru
      _
    %v38 = vld [vmem:[#allocation5 + $0x5] sm:$0x1]
    %v39 = vld [vmem:[#allocation2] sm:$0xff]
    %v40 = vld [vmem:[#allocation5] sm:$0x1]
    %42 = vset.pattern.permute.xlu0 0
    %43 = vperm.xlu0 %42, %v39
    %v44 = vpop.permute.xlu0 %43
    %v46 = vlaneseq
    %v47 = vshrl.u32 %v46, 7
    %v48 = vsub.s32 0, %v47
    %v49 = vrot.slane %v40, %v48
    %v50 = vmul.f32 %v44, %v49
    %v51 = vlaneseq
    %v52 = vshrl.u32 %v51, 7
    %v53 = vsub.s32 0, %v52
    %v54 = vrot.slane %v38, %v53
    %v55 = vadd.f32 %v54, %v50
    %v56 = vld [vmem:[#allocation5 + $0x1] sm:$0x1]
    %57 = vset.pattern.permute.xlu0 1
    %58 = vperm.xlu0 %57, %v39
    %v59 = vpop.permute.xlu0 %58
    %v61 = vlaneseq
    %v62 = vshrl.u32 %v61, 7
    %v63 = vsub.s32 0, %v62
    %v64 = vrot.slane %v56, %v63
    %v65 = vmul.f32 %v59, %v64
    %v66 = vadd.f32 %v55, %v65
    %v67 = vld [vmem:[#allocation5 + $0x2] sm:$0x1]
    %68 = vset.pattern.permute.xlu0 2
    %69 = vperm.xlu0 %68, %v39
    %v70 = vpop.permute.xlu0 %69
    %v72 = vlaneseq
    %v73 = vshrl.u32 %v72, 7
    %v74 = vsub.s32 0, %v73
    %v75 = vrot.slane %v67, %v74
    %v76 = vmul.f32 %v70, %v75
    %v77 = vadd.f32 %v66, %v76
    %v78 = vld [vmem:[#allocation5 + $0x3] sm:$0x1]
    %79 = vset.pattern.permute.xlu0 3
    %80 = vperm.xlu0 %79, %v39
    %v81 = vpop.permute.xlu0 %80
    %v83 = vlaneseq
    %v84 = vshrl.u32 %v83, 7
    %v85 = vsub.s32 0, %v84
    %v86 = vrot.slane %v78, %v85
    %v87 = vmul.f32 %v81, %v86
    %v88 = vadd.f32 %v77, %v87
    %v89 = vld [vmem:[#allocation5 + $0x4] sm:$0x1]
    %90 = vset.pattern.permute.xlu0 4
    %91 = vperm.xlu0 %90, %v39
    %v92 = vpop.permute.xlu0 %91
    %v94 = vlaneseq
    %v95 = vshrl.u32 %v94, 7
    %v96 = vsub.s32 0, %v95
    %v97 = vrot.slane %v89, %v96
    %v98 = vmul.f32 %v92, %v97
    %v99 = vadd.f32 %v88, %v98
    %v100 = vrot.slane %v99, 4
    %v101 = vadd.f32 %v99, %v100
    %v102 = vrot.slane %v101, 2
    %v103 = vadd.f32 %v101, %v102
    %v104 = vrot.slane %v103, 1
    %v105 = vadd.f32 %v103, %v104
    %v106 = vrcp.pop 8.0
    %v107 = vmul.f32 %v105, %v106
    %v108 = vsub.f32 %v99, %v107
    %v109 = vmul.f32 %v108, %v108
    %v110 = vrot.slane %v109, 4
    %v111 = vadd.f32 %v109, %v110
    %v112 = vrot.slane %v111, 2
    %v113 = vadd.f32 %v111, %v112
    %v114 = vrot.slane %v113, 1
    %v115 = vadd.f32 %v113, %v114
    %v116 = vmul.f32 %v115, %v106
    %v117 = vadd.f32 %v116, 1e-05
    %v118 = vrsqrt.pop %v117
    %v119 = vmul.f32 %v108, %v118
    %v120 = vld [vmem:[#allocation5 + $0x6] sm:$0x1]
    %v121 = vlaneseq
    %v122 = vshrl.u32 %v121, 7
    %v123 = vsub.s32 0, %v122
    %v124 = vrot.slane %v120, %v123
    %v125 = vmul.f32 %v119, %v124
    %v126 = vld [vmem:[#allocation5 + $0x7] sm:$0x1]
    %v127 = vlaneseq
    %v128 = vshrl.u32 %v127, 7
    %v129 = vsub.s32 0, %v128
    %v130 = vrot.slane %v126, %v129
    %v131 = vadd.f32 %v125, %v130
    %132 = vst [vmem:[%s2] sm:$0xff] %v131
    %133 = vadd.xlane.f32.xlu0 %v131
    %v134 = vpop.xlane.xlu0 %133
    %v135 = vrot.slane %v134, 4
    %v136 = vadd.f32 %v134, %v135
    %v137 = vrot.slane %v136, 2
    %v138 = vadd.f32 %v136, %v137
    %v139 = vrot.slane %v138, 1
    %v140 = vadd.f32 %v138, %v139
    %s141 = vtos %v140
    %s142 = scalar_lea.smem [#allocation7], 0
    %143 = sst [smem:[%s142]] %s141
    // Predicated region
    $region18: #{dummy_model_forward.1} parent=1 // pred_check
      _
    $region19: #{dummy_model_forward.1} parent=1 // pred_check_branch
      %145 = sbr.rel (0) target = $region21
    $region20: #{dummy_model_forward.1} parent=1 // pred_region
      _
    $region21: #{dummy_model_forward.1} parent=1 // pred_fallthru
      _
    // Predicated region
    $region22: #{dummy_model_forward.1} parent=1 // pred_check
      _
    $region23: #{dummy_model_forward.1} parent=1 // pred_check_branch
      %147 = sbr.rel (0) target = $region25
    $region24: #{dummy_model_forward.1} parent=1 // pred_region
      %s149 = ssub.s32 16, 16
      %150 = vsyncadd [#allocation4], %s149
      %153 = dma.smem_to_hbm [#allocation7], 16, %s3, [#allocation4]
    $region25: #{dummy_model_forward.1} parent=1 // pred_fallthru
      _
    // Predicated region
    $region26: #{dummy_model_forward.1} parent=1 // pred_check
      _
    $region27: #{dummy_model_forward.1} parent=1 // pred_check_branch
      %155 = sbr.rel (0) target = $region29
    $region28: #{dummy_model_forward.1} parent=1 // pred_region
      _
    $region29: #{dummy_model_forward.1} parent=1 // pred_fallthru
      _
    // Predicated region
    $region30: #{dummy_model_forward.1} parent=1 // pred_check
      _
    $region31: #{dummy_model_forward.1} parent=1 // pred_check_branch
      %157 = sbr.rel (0) target = $region33
    $region32: #{dummy_model_forward.1} parent=1 // pred_region
      %158 = dma.done [#allocation4], 16
    $region33: #{dummy_model_forward.1} parent=1 // pred_fallthru
      _
    %159 = sfence
    %160 = vsyncpa [#allocation3], 1
    %161 = vsyncpa [#allocation6], 1
    %162 = vsyncpa [#allocation4], 1

</llo_original>
